<compile_context>
chip_gen: v5e
topology: v5e:2x2
jax: 0.10.0
libtpu: 0.0.40
codegen_flags: <defaults>
</compile_context>

<pallas_src>
import functools

import jax
import jax.numpy as jnp
from jax.experimental import pallas as pl
from jax.experimental.pallas import tpu as pltpu


def _nearest_indices(out_size: int, in_size: int) -> jnp.ndarray:
    # PyTorch "nearest" mode: src = floor(dst * in/out), clamped.
    # NOTE: keep the float-based formula; it matches ATen's nearest index math.
    scale = in_size / out_size
    idx = jnp.floor(jnp.arange(out_size, dtype=jnp.float32) * scale).astype(jnp.int32)
    return jnp.clip(idx, 0, in_size - 1)


def _output_hw(size, in_h: int, in_w: int):
    # torchvision Resize: int -> match smaller edge keeping aspect ratio;
    # (h, w) tuple -> exact output size.
    if isinstance(size, int):
        if in_w <= in_h:
            ow = size
            oh = int(size * in_h / in_w)
        else:
            oh = size
            ow = int(size * in_w / in_h)
        return oh, ow
    return int(size[0]), int(size[1])


def _choose_batch(nc: int, hi: int, wi: int, ho: int, wo: int, itemsize: int,
                  target_bytes: int = 2 << 20, max_batch: int = 64) -> int:
    """Largest divisor of nc that (a) fits a modest per-block VMEM budget,
    (b) keeps >= 2 grid steps when possible (v7x has 2 TensorCores),
    (c) keeps the per-plane unrolled loop short."""
    per_plane = (hi * wi + ho * wo + hi * wo) * max(itemsize, 4)
    best = 1
    for b in range(1, nc + 1):
        if nc % b != 0 or b > max_batch:
            continue
        if b * per_plane > target_bytes:
            continue
        if nc // b >= 2 or nc == 1:
            best = max(best, b)
    return best


def _resize_kernel(img_ref, rh_ref, rwt_ref, out_ref, *, h_first: bool, compute_dtype):
    # img_ref : (B, Hi, Wi)  batch of (n, c) planes
    # rh_ref  : (Ho, Hi)     one-hot row selector
    # rwt_ref : (Wi, Wo)     one-hot col selector (transposed)
    # out_ref : (B, Ho, Wo)
    b, hi, wi = img_ref.shape
    ho = rh_ref.shape[0]
    wo = rwt_ref.shape[1]

    img = img_ref[...].astype(compute_dtype)   # no-op for f32 / bf16 inputs
    rh = rh_ref[...]
    rwt = rwt_ref[...]

    if h_first:
        # Per-plane row selection (shrinks H first), then ONE batched W-selection matmul.
        rows = [
            jnp.dot(rh, img[i], preferred_element_type=jnp.float32).astype(compute_dtype)
            for i in range(b)
        ]                                                            # B x (Ho, Wi)
        stacked = jnp.concatenate(rows, axis=0)                      # (B*Ho, Wi)
        out = jnp.dot(stacked, rwt, preferred_element_type=jnp.float32)  # (B*Ho, Wo)
        out_ref[...] = out.reshape(b, ho, wo).astype(out_ref.dtype)
    else:
        # ONE batched W-selection matmul, then per-plane row selection.
        tmp = jnp.dot(img.reshape(b * hi, wi), rwt,
                      preferred_element_type=jnp.float32)            # (B*Hi, Wo)
        tmp = tmp.astype(compute_dtype).reshape(b, hi, wo)
        for i in range(b):
            out_ref[i] = jnp.dot(rh, tmp[i],
                                 preferred_element_type=jnp.float32).astype(out_ref.dtype)


def custom_resize_nearest(image: jax.Array, size) -> jax.Array:
    """Nearest-neighbor resize of an NCHW image, matching torchvision Resize(NEAREST)."""
    n, c, hi, wi = image.shape
    ho, wo = _output_hw(size, hi, wi)
    nc = n * c

    row_idx = _nearest_indices(ho, hi)  # (Ho,)
    col_idx = _nearest_indices(wo, wi)  # (Wo,)

    # bf16 stays bf16 on the MXU (native rate; 0/1 selection + f32 accumulate is exact).
    compute_dtype = jnp.bfloat16 if image.dtype == jnp.bfloat16 else jnp.float32

    # One-hot selection matrices (exact gather via matmul with 0/1 entries).
    rh = (row_idx[:, None] == jnp.arange(hi)[None, :]).astype(compute_dtype)   # (Ho, Hi)
    rwt = (jnp.arange(wi)[:, None] == col_idx[None, :]).astype(compute_dtype)  # (Wi, Wo)

    x = image.reshape(nc, hi, wi)

    bsz = _choose_batch(nc, hi, wi, ho, wo, jnp.dtype(compute_dtype).itemsize)
    grid = nc // bsz

    # Apply the selector that shrinks the tensor more first (static MAC comparison).
    h_first = (ho * hi * wi + ho * wi * wo) <= (hi * wi * wo + ho * hi * wo)

    kernel = functools.partial(_resize_kernel, h_first=h_first, compute_dtype=compute_dtype)

    # Explicit VMEM budget: double-buffered in/out blocks + selectors + headroom.
    io_item = jnp.dtype(image.dtype).itemsize
    sel_item = jnp.dtype(compute_dtype).itemsize
    block_bytes = bsz * (hi * wi + ho * wo) * io_item + bsz * hi * wo * 4
    sel_bytes = (ho * hi + wi * wo) * sel_item
    vmem_limit = int(min(max(4 * block_bytes + 2 * sel_bytes + (4 << 20), 8 << 20), 48 << 20))

    # TODO(synk): for large downsamples, fetch only the Ho needed rows at DMA time
    # (scalar-prefetch row indices) instead of the dense Rh matmul.
    out = pl.pallas_call(
        kernel,
        out_shape=jax.ShapeDtypeStruct((nc, ho, wo), image.dtype),
        grid_spec=pltpu.PrefetchScalarGridSpec(
            num_scalar_prefetch=0,
            grid=(grid,),
            in_specs=[
                pl.BlockSpec((bsz, hi, wi), lambda i: (i, 0, 0)),
                # Selectors: constant block index -> DMA'd once, revisited thereafter.
                pl.BlockSpec((ho, hi), lambda i: (0, 0)),
                pl.BlockSpec((wi, wo), lambda i: (0, 0)),
            ],
            out_specs=pl.BlockSpec((bsz, ho, wo), lambda i: (i, 0, 0)),
        ),
        compiler_params=pltpu.CompilerParams(
            dimension_semantics=("parallel",),
            vmem_limit_bytes=vmem_limit,
        ),
    )(x, rh, rwt)

    return out.reshape(n, c, ho, wo)


if __name__ == "__main__":
    key = jax.random.PRNGKey(0)
    x = jax.random.normal(key, (2, 4, 16, 16), dtype=jnp.float32)
    size = (8, 12)  # (out_h, out_w)

    y = custom_resize_nearest(x, size)
    y = jax.block_until_ready(y)

    # Pure-JAX reference: direct nearest gather.
    hi, wi = x.shape[2], x.shape[3]
    ho, wo = size
    ridx = _nearest_indices(ho, hi)
    cidx = _nearest_indices(wo, wi)
    ref = x[:, :, ridx, :][:, :, :, cidx]

    assert y.shape == (2, 4, ho, wo), y.shape
    assert jnp.allclose(y, ref), "f32 mismatch vs nearest-gather reference"

    # bf16 fast path (native MXU dtype; 0/1 selection stays exact).
    xb = x.astype(jnp.bfloat16)
    yb = jax.block_until_ready(custom_resize_nearest(xb, size))
    refb = xb[:, :, ridx, :][:, :, :, cidx]
    assert yb.dtype == jnp.bfloat16
    assert jnp.allclose(yb.astype(jnp.float32), refb.astype(jnp.float32)), \
        "bf16 mismatch vs nearest-gather reference"

    print("KERNEL_OK")
</pallas_src>

<mosaic_0001>
module attributes {stable_mosaic.version = 11 : i64} {
  func.func @_resize_kernel(%arg0: i32, %arg1: memref<4x16x16xf32, #tpu.memory_space<vmem>>, %arg2: memref<8x16xf32, #tpu.memory_space<vmem>>, %arg3: memref<16x12xf32, #tpu.memory_space<vmem>>, %arg4: memref<4x8x12xf32, #tpu.memory_space<vmem>>) attributes {dimension_semantics = [#tpu.dimension_semantics<parallel>], iteration_bounds = array<i64: 2>, scalar_prefetch = 0 : i64, scratch_operands = 0 : i64, tpu.core_type = #tpu.core_type<tc>, window_params = [{transform_indices = @transform_0, window_bounds = array<i64: 4, 16, 16>}, {pipeline_mode = #tpu.pipeline_mode<synchronous>, transform_indices = @transform_1, window_bounds = array<i64: 8, 16>}, {pipeline_mode = #tpu.pipeline_mode<synchronous>, transform_indices = @transform_2, window_bounds = array<i64: 16, 12>}, {transform_indices = @transform_3, window_bounds = array<i64: 4, 8, 12>}]} {
    %c0 = arith.constant 0 : index
    %c0_0 = arith.constant 0 : index
    %c0_1 = arith.constant 0 : index
    %0 = vector.load %arg1[%c0, %c0_0, %c0_1] : memref<4x16x16xf32, #tpu.memory_space<vmem>>, vector<4x16x16xf32>
    %c0_2 = arith.constant 0 : index
    %c0_3 = arith.constant 0 : index
    %1 = vector.load %arg2[%c0_2, %c0_3] : memref<8x16xf32, #tpu.memory_space<vmem>>, vector<8x16xf32>
    %c0_4 = arith.constant 0 : index
    %c0_5 = arith.constant 0 : index
    %2 = vector.load %arg3[%c0_4, %c0_5] : memref<16x12xf32, #tpu.memory_space<vmem>>, vector<16x12xf32>
    %3 = vector.extract_strided_slice %0 {offsets = [0, 0, 0], sizes = [1, 16, 16], strides = [1, 1, 1]} : vector<4x16x16xf32> to vector<1x16x16xf32>
    %4 = vector.shape_cast %3 : vector<1x16x16xf32> to vector<16x16xf32>
    %cst = arith.constant dense<0.000000e+00> : vector<8x16xf32>
    %5 = tpu.matmul %1, %4, %cst {dimension_numbers = #tpu.dot_dimension_numbers<[1], [0], [0], [1], [0, 0, 1, 1], [], []>} : vector<8x16xf32>, vector<16x16xf32>, vector<8x16xf32> -> vector<8x16xf32>
    %6 = vector.extract_strided_slice %0 {offsets = [1, 0, 0], sizes = [1, 16, 16], strides = [1, 1, 1]} : vector<4x16x16xf32> to vector<1x16x16xf32>
    %7 = vector.shape_cast %6 : vector<1x16x16xf32> to vector<16x16xf32>
    %cst_6 = arith.constant dense<0.000000e+00> : vector<8x16xf32>
    %8 = tpu.matmul %1, %7, %cst_6 {dimension_numbers = #tpu.dot_dimension_numbers<[1], [0], [0], [1], [0, 0, 1, 1], [], []>} : vector<8x16xf32>, vector<16x16xf32>, vector<8x16xf32> -> vector<8x16xf32>
    %9 = vector.extract_strided_slice %0 {offsets = [2, 0, 0], sizes = [1, 16, 16], strides = [1, 1, 1]} : vector<4x16x16xf32> to vector<1x16x16xf32>
    %10 = vector.shape_cast %9 : vector<1x16x16xf32> to vector<16x16xf32>
    %cst_7 = arith.constant dense<0.000000e+00> : vector<8x16xf32>
    %11 = tpu.matmul %1, %10, %cst_7 {dimension_numbers = #tpu.dot_dimension_numbers<[1], [0], [0], [1], [0, 0, 1, 1], [], []>} : vector<8x16xf32>, vector<16x16xf32>, vector<8x16xf32> -> vector<8x16xf32>
    %12 = vector.extract_strided_slice %0 {offsets = [3, 0, 0], sizes = [1, 16, 16], strides = [1, 1, 1]} : vector<4x16x16xf32> to vector<1x16x16xf32>
    %13 = vector.shape_cast %12 : vector<1x16x16xf32> to vector<16x16xf32>
    %cst_8 = arith.constant dense<0.000000e+00> : vector<8x16xf32>
    %14 = tpu.matmul %1, %13, %cst_8 {dimension_numbers = #tpu.dot_dimension_numbers<[1], [0], [0], [1], [0, 0, 1, 1], [], []>} : vector<8x16xf32>, vector<16x16xf32>, vector<8x16xf32> -> vector<8x16xf32>
    %15 = tpu.concatenate %5, %8, %11, %14 in 0 : vector<8x16xf32>, vector<8x16xf32>, vector<8x16xf32>, vector<8x16xf32> -> vector<32x16xf32>
    %cst_9 = arith.constant dense<0.000000e+00> : vector<32x12xf32>
    %16 = tpu.matmul %15, %2, %cst_9 {dimension_numbers = #tpu.dot_dimension_numbers<[1], [0], [0], [1], [0, 0, 1, 1], [], []>} : vector<32x16xf32>, vector<16x12xf32>, vector<32x12xf32> -> vector<32x12xf32>
    %17 = vector.shape_cast %16 : vector<32x12xf32> to vector<4x8x12xf32>
    %c0_10 = arith.constant 0 : index
    %c0_11 = arith.constant 0 : index
    %c0_12 = arith.constant 0 : index
    %18 = vector.load %arg4[%c0_10, %c0_11, %c0_12] : memref<4x8x12xf32, #tpu.memory_space<vmem>>, vector<4x8x12xf32>
    tpu.vector_store %arg4[%c0_10, %c0_11, %c0_12], %17 {strides = array<i32>} : memref<4x8x12xf32, #tpu.memory_space<vmem>>, vector<4x8x12xf32>,
    return
  }
  func.func @transform_0(%arg0: i32) -> (i32, i32, i32) {
    %c0_i32 = arith.constant 0 : i32
    %c0_i32_0 = arith.constant 0 : i32
    %c0_i32_1 = arith.constant 0 : i32
    return %arg0, %c0_i32, %c0_i32_0 : i32, i32, i32
  }
  func.func @transform_1(%arg0: i32) -> (i32, i32) {
    %c0_i32 = arith.constant 0 : i32
    %c0_i32_0 = arith.constant 0 : i32
    %c0_i32_1 = arith.constant 0 : i32
    return %c0_i32, %c0_i32_0 : i32, i32
  }
  func.func @transform_2(%arg0: i32) -> (i32, i32) {
    %c0_i32 = arith.constant 0 : i32
    %c0_i32_0 = arith.constant 0 : i32
    %c0_i32_1 = arith.constant 0 : i32
    return %c0_i32, %c0_i32_0 : i32, i32
  }
  func.func @transform_3(%arg0: i32) -> (i32, i32, i32) {
    %c0_i32 = arith.constant 0 : i32
    %c0_i32_0 = arith.constant 0 : i32
    %c0_i32_1 = arith.constant 0 : i32
    return %arg0, %c0_i32, %c0_i32_0 : i32, i32, i32
  }
}

</mosaic_0001>

<llo_original>
// kernel: tpu_custom_call.1
$region0: #{tpu_custom_call.1}
  #allocation0 [shape = 'u32[]', space=smem, size = 0x4, offset = 0x4, fixed_abs, tag = 'smem constant byte address 0x4 - core index']
  #allocation1 [shape = 'u32[72,128]{1,0:T(1,128)}', space=vmem, size = 0x9000, scoped, tag = 'internal scratch']
  %s0 = inlined_call_operand.hbm [shape: f32[8,16,16], index: 0, kind: input, shape index: {}]
  %s1 = inlined_call_operand.hbm [shape: f32[8,16], index: 1, kind: input, shape index: {}]
  %s2 = inlined_call_operand.hbm [shape: f32[16,12], index: 2, kind: input, shape index: {}]
  %s3 = inlined_call_operand.hbm [shape: f32[8,8,12], index: 3, kind: output, shape index: {}]
  %s4 = sld [smem:[#allocation0]]
  $region57: #{tpu_custom_call.1} parent=0
    _
  %s6 = ssub.s32 1, %s4
  %s7 = scalar_select 0, %s6, %s4
  $region1: #{tpu_custom_call.1} parent=0
    #allocation2 [shape = 'u8[65536]{0}', space=vmem, size = 0x10000, scoped, tag = 'input window, operand 0']
    #allocation3 [shape = 's32[2]{0}', space=sflag, size = 0x8, scoped, tag = 'scoped memory for tpu_custom_call.1']
    #allocation4 [shape = 's32[2]{0}', space=sflag, size = 0x8, scoped, tag = 'scoped memory for tpu_custom_call.1']
    #allocation5 [shape = 'u8[4096]{0}', space=vmem, size = 0x1000, scoped, tag = 'input window, operand 1, single buffered']
    #allocation6 [shape = 's32[1]{0}', space=sflag, size = 0x4, scoped, tag = 'scoped memory for tpu_custom_call.1']
    #allocation7 [shape = 'u8[8192]{0}', space=vmem, size = 0x2000, scoped, tag = 'input window, operand 2, single buffered']
    #allocation8 [shape = 'u8[32768]{0}', space=vmem, size = 0x8000, scoped, tag = 'output window, operand 0']
    %8 = vsyncpa [#allocation3], 0
    %s9 = scalar_lea.sflag [#allocation3], 1
    %10 = vsyncpa %s9, 0
    %11 = vsyncpa [#allocation6], 0
    %12 = vsyncpa [#allocation4], 0
    %s13 = scalar_lea.sflag [#allocation4], 1
    %14 = vsyncpa %s13, 0
    loop: start=0, step=1, limit=4
    $region2: #{tpu_custom_call.1} parent=1 // loop_pre_header
      _
    $region3: #{tpu_custom_call.1} parent=1 // loop_header
      %s16 = sphi 0, %s20
      %p17 = scmp.ge.s32.totalorder %s16, 4
      %s26 = sphi 0, %s28
      %s29 = sphi 0, %s26
      %s30 = sphi 0, %s29
      %s46 = sphi 0, %s30
      %s50 = sphi 0, %s50
      %s52 = sphi 0, %s50
      %s53 = sphi 0, %s52
      %s67 = sphi 0, %s53
      %s71 = sphi 0, %s71
      %s73 = sphi 0, %s71
      %s74 = sphi 0, %s73
      %s88 = sphi 0, %s74
      %s94 = sphi 0, %s96
      %s97 = sphi 0, %s94
      %s98 = sphi 0, %s97
      %s114 = sphi 0, %s98
    $region4: #{tpu_custom_call.1} parent=1 // loop_header_branch
      %19 = sbr.rel (%p17) target = $region8
    $region5: #{tpu_custom_call.1} parent=1 // loop_body
      %s21 = ssub.s32 %s16, 1
      %s22 = ssub.s32 %s16, 2
      %s23 = sadd.s32 %s16, 1
      %s24 = ssub.s32 %s16, %s23
      %p25 = scmp.eq.s32.totalorder %s24, 0
      %s27 = sadd.s32 %s26, 1
      %s28 = scalar_select %p25, %s26, %s27
      %p31 = pneg %p25
      %p32 = scmp.eq.s32.totalorder %s16, 1
      %p33 = por %p31, %p32
      %p34 = scmp.ne.s32.totalorder %s26, %s29
      %p35 = scmp.eq.s32.totalorder %s16, 0
      %p36 = por %p34, %p35
      %p37 = scmp.ne.s32.totalorder %s26, %s29
      %p38 = scmp.eq.s32.totalorder %s21, 1
      %p39 = por %p37, %p38
      %p40 = scmp.ne.s32.totalorder %s29, %s30
      %p41 = scmp.eq.s32.totalorder %s21, 0
      %p42 = por %p40, %p41
      %p43 = scmp.ne.s32.totalorder %s29, %s30
      %p44 = scmp.eq.s32.totalorder %s22, 1
      %p45 = por %p43, %p44
      %p47 = scmp.ne.s32.totalorder %s30, %s46
      %p48 = scmp.eq.s32.totalorder %s22, 0
      %p49 = por %p47, %p48
      %s51 = sadd.s32 %s50, 1
      %p54 = scmp.eq.s32.totalorder %s16, 1
      %p55 = scmp.ne.s32.totalorder %s50, %s52
      %p56 = scmp.eq.s32.totalorder %s16, 0
      %p57 = por %p55, %p56
      %p58 = scmp.ne.s32.totalorder %s50, %s52
      %p59 = scmp.eq.s32.totalorder %s21, 1
      %p60 = por %p58, %p59
      %p61 = scmp.ne.s32.totalorder %s52, %s53
      %p62 = scmp.eq.s32.totalorder %s21, 0
      %p63 = por %p61, %p62
      %p64 = scmp.ne.s32.totalorder %s52, %s53
      %p65 = scmp.eq.s32.totalorder %s22, 1
      %p66 = por %p64, %p65
      %p68 = scmp.ne.s32.totalorder %s53, %s67
      %p69 = scmp.eq.s32.totalorder %s22, 0
      %p70 = por %p68, %p69
      %s72 = sadd.s32 %s71, 1
      %p75 = scmp.eq.s32.totalorder %s16, 1
      %p76 = scmp.ne.s32.totalorder %s71, %s73
      %p77 = scmp.eq.s32.totalorder %s16, 0
      %p78 = por %p76, %p77
      %p79 = scmp.ne.s32.totalorder %s71, %s73
      %p80 = scmp.eq.s32.totalorder %s21, 1
      %p81 = por %p79, %p80
      %p82 = scmp.ne.s32.totalorder %s73, %s74
      %p83 = scmp.eq.s32.totalorder %s21, 0
      %p84 = por %p82, %p83
      %p85 = scmp.ne.s32.totalorder %s73, %s74
      %p86 = scmp.eq.s32.totalorder %s22, 1
      %p87 = por %p85, %p86
      %p89 = scmp.ne.s32.totalorder %s74, %s88
      %p90 = scmp.eq.s32.totalorder %s22, 0
      %p91 = por %p89, %p90
      %s92 = ssub.s32 %s16, %s23
      %p93 = scmp.eq.s32.totalorder %s92, 0
      %s95 = sadd.s32 %s94, 1
      %s96 = scalar_select %p93, %s94, %s95
      %p99 = pneg %p93
      %p100 = scmp.eq.s32.totalorder %s16, 1
      %p101 = por %p99, %p100
      %p102 = scmp.ne.s32.totalorder %s94, %s97
      %p103 = scmp.eq.s32.totalorder %s16, 0
      %p104 = por %p102, %p103
      %p105 = scmp.ne.s32.totalorder %s94, %s97
      %p106 = scmp.eq.s32.totalorder %s21, 1
      %p107 = por %p105, %p106
      %p108 = scmp.ne.s32.totalorder %s97, %s98
      %p109 = scmp.eq.s32.totalorder %s21, 0
      %p110 = por %p108, %p109
      %p111 = scmp.ne.s32.totalorder %s97, %s98
      %p112 = scmp.eq.s32.totalorder %s22, 1
      %p113 = por %p111, %p112
      %p115 = scmp.ne.s32.totalorder %s98, %s114
      %p116 = scmp.eq.s32.totalorder %s22, 0
      %p117 = por %p115, %p116
      %p118 = scmp.le.s32.totalorder 1, %s16
      %p119 = scmp.lt.s32.totalorder %s16, 3
      %p120 = pnand %p118, %p119
      %p121 = pneg %p120
      // Predicated region
      $region9: #{tpu_custom_call.1} parent=5 // pred_check
        _
      $region10: #{tpu_custom_call.1} parent=5 // pred_check_branch
        %123 = sbr.rel (%p120) target = $region12
      $region11: #{tpu_custom_call.1} parent=5 // pred_region
        %s124 = ssub.s32 %s16, 1
        // Predicated region
        $region13: #{tpu_custom_call.1} parent=11 // pred_check
          %p125 = pneg %p63
        $region14: #{tpu_custom_call.1} parent=11 // pred_check_branch
          %127 = sbr.rel (%p125) target = $region16
        $region15: #{tpu_custom_call.1} parent=11 // pred_region
          %129 = vsyncadd [#allocation6], 0
          %s131 = sshll.u32 %s1, 4
          %s132 = int_to_ptr.hbm [resolvable:$true] %s131
          %s133 = sshll.u32 [#allocation5], 4
          %s134 = int_to_ptr.vmem [resolvable:$true] %s133
          %136 = dma.hbm_to_vmem [thread:$0]  %s132, 128, %s134, [#allocation6]
        $region16: #{tpu_custom_call.1} parent=11 // pred_fallthru
          _
        // Predicated region
        $region17: #{tpu_custom_call.1} parent=11 // pred_check
          %p137 = pneg %p84
        $region18: #{tpu_custom_call.1} parent=11 // pred_check_branch
          %139 = sbr.rel (%p137) target = $region20
        $region19: #{tpu_custom_call.1} parent=11 // pred_region
          %141 = vsyncadd [#allocation6], 0
          %s142 = sshll.u32 %s2, 4
          %s143 = int_to_ptr.hbm [resolvable:$true] %s142
          %s144 = sshll.u32 [#allocation7], 4
          %s145 = int_to_ptr.vmem [resolvable:$true] %s144
          %150 = dma.hbm_to_vmem [thread:$0]  %s143, 256, %s145, [#allocation6], 128, 128, 8
        $region20: #{tpu_custom_call.1} parent=11 // pred_fallthru
          _
      $region12: #{tpu_custom_call.1} parent=5 // pred_fallthru
        _
      %p151 = scmp.lt.s32.totalorder %s16, 2
      // Predicated region
      $region21: #{tpu_custom_call.1} parent=5 // pred_check
        %p152 = pneg %p151
      $region22: #{tpu_custom_call.1} parent=5 // pred_check_branch
        %154 = sbr.rel (%p152) target = $region24
      $region23: #{tpu_custom_call.1} parent=5 // pred_region
        // Predicated region
        $region25: #{tpu_custom_call.1} parent=23 // pred_check
          %p155 = pneg %p36
        $region26: #{tpu_custom_call.1} parent=23 // pred_check_branch
          %157 = sbr.rel (%p155) target = $region28
        $region27: #{tpu_custom_call.1} parent=23 // pred_region
          %s158 = sand.u32 %s26, 1
          %s159 = scalar_lea.sflag [#allocation3], %s158
          %s160 = sand.u32 %s26, 1
          %s161 = smul.addr %s160, 64
          %s162 = scalar_lea.vmem [#allocation2], %s161
          %s163 = smul.u32 4, %s16
          %165 = vsyncadd %s159, 0
          %s166 = smul.addr %s163, 2
          %s167 = smul.addr %s166, 8
          %s168 = scalar_lea.hbm %s0, %s167
          %s169 = sshll.u32 %s168, 4
          %s170 = int_to_ptr.hbm [resolvable:$true] %s169
          %s171 = sshll.u32 %s162, 4
          %s172 = int_to_ptr.vmem [resolvable:$true] %s171
          %177 = dma.hbm_to_vmem [thread:$0]  %s170, 1024, %s172, %s159, 128, 128, 8
        $region28: #{tpu_custom_call.1} parent=23 // pred_fallthru
          _
      $region24: #{tpu_custom_call.1} parent=5 // pred_fallthru
        _
      %p178 = scmp.le.s32.totalorder 1, %s16
      %p179 = scmp.lt.s32.totalorder %s16, 3
      %p180 = pnand %p178, %p179
      %p181 = pneg %p180
      // Predicated region
      $region29: #{tpu_custom_call.1} parent=5 // pred_check
        _
      $region30: #{tpu_custom_call.1} parent=5 // pred_check_branch
        %183 = sbr.rel (%p180) target = $region32
      $region31: #{tpu_custom_call.1} parent=5 // pred_region
        %s184 = ssub.s32 %s16, 1
        %s185 = sand.u32 %s29, 1
        %s186 = scalar_lea.sflag [#allocation3], %s185
        %s187 = sand.u32 %s29, 1
        %s188 = smul.addr %s187, 64
        %s189 = scalar_lea.vmem [#allocation2], %s188
        // Predicated region
        $region33: #{tpu_custom_call.1} parent=31 // pred_check
          %p190 = pneg %p42
        $region34: #{tpu_custom_call.1} parent=31 // pred_check_branch
          %192 = sbr.rel (%p190) target = $region36
        $region35: #{tpu_custom_call.1} parent=31 // pred_region
          %194 = dma.done %s186, 1024
        $region36: #{tpu_custom_call.1} parent=31 // pred_fallthru
          _
        // Predicated region
        $region37: #{tpu_custom_call.1} parent=31 // pred_check
          %p195 = pneg %p63
        $region38: #{tpu_custom_call.1} parent=31 // pred_check_branch
          %197 = sbr.rel (%p195) target = $region40
        $region39: #{tpu_custom_call.1} parent=31 // pred_region
          %199 = dma.done [#allocation6], 128
        $region40: #{tpu_custom_call.1} parent=31 // pred_fallthru
          _
        // Predicated region
        $region41: #{tpu_custom_call.1} parent=31 // pred_check
          %p200 = pneg %p84
        $region42: #{tpu_custom_call.1} parent=31 // pred_check_branch
          %202 = sbr.rel (%p200) target = $region44
        $region43: #{tpu_custom_call.1} parent=31 // pred_region
          %204 = dma.done [#allocation6], 256
        $region44: #{tpu_custom_call.1} parent=31 // pred_fallthru
          _
        %s205 = sand.u32 %s29, 1
        %s206 = scalar_lea.sflag [#allocation3], %s205
        %s207 = sand.u32 %s29, 1
        %s208 = smul.addr %s207, 64
        %s209 = scalar_lea.vmem [#allocation2], %s208
        %p210 = pneg %p42
        %p211 = pneg %p39
        %p212 = pneg %p63
        %p213 = pneg %p60
        %p214 = pneg %p84
        %p215 = pneg %p81
        %p216 = pneg %p110
        %p217 = pneg %p107
        %s218 = sand.u32 %s97, 1
        %s219 = scalar_lea.sflag [#allocation4], %s218
        %s220 = sand.u32 %s97, 1
        %s221 = smul.addr %s220, 32
        %s222 = scalar_lea.vmem [#allocation8], %s221
        %s223 = smul.u32 4, %s21
        %s224 = smul.u32 4, %s21
        %v225 = vld [vmem:[%s189] sm:$0xff]
        %v226 = vld [vmem:[%s189 + $0x8] sm:$0xff]
        %v227 = vld [vmem:[%s189 + $0x10] sm:$0xff]
        %v228 = vld [vmem:[%s189 + $0x18] sm:$0xff]
        %v229 = vld [vmem:[%s189 + $0x20] sm:$0xff]
        %v230 = vld [vmem:[%s189 + $0x28] sm:$0xff]
        %v231 = vld [vmem:[%s189 + $0x30] sm:$0xff]
        %v232 = vld [vmem:[%s189 + $0x38] sm:$0xff]
        %v233 = vld [vmem:[#allocation5] sm:$0xff]
        %v234 = vld [vmem:[#allocation7] sm:$0xff]
        %v235 = vld [vmem:[#allocation7 + $0x8] sm:$0xff]
        %vm236 = vcmask 130048
        %v238 = vsel %vm236, %v233, 0
        %240 = vmatpush.msra.mxu0 0.0
        %241 = vmatpush.msra.mxu0 0.0
        %242 = vmatpush.msra.mxu0 0.0
        %243 = vmatpush.msra.mxu0 0.0
        %244 = vmatpush.msra.mxu0 0.0
        %245 = vmatpush.msra.mxu0 0.0
        %246 = vmatpush.msra.mxu0 0.0
        %247 = vmatpush.msra.mxu0 0.0
        %248 = vmatpush.msra.mxu0 0.0
        %249 = vmatpush.msra.mxu0 0.0
        %250 = vmatpush.msra.mxu0 0.0
        %251 = vmatpush.msra.mxu0 0.0
        %252 = vmatpush.msra.mxu0 0.0
        %253 = vmatpush.msra.mxu0 0.0
        %254 = vmatpush.msra.mxu0 %v226
        %255 = vmatpush.msra.mxu0 %v225
        %256 = vmatmul.f32.gmra.mxu0 %v238
        %v257 = vpop.f32.mrf.mxu0
        %v258 = vadd.f32 0.0, %v257
        %259 = vdwg.mxu0
        %260 = vmatpush.msra.mxu0 0.0
        %261 = vmatpush.msra.mxu0 0.0
        %262 = vmatpush.msra.mxu0 0.0
        %263 = vmatpush.msra.mxu0 0.0
        %264 = vmatpush.msra.mxu0 0.0
        %265 = vmatpush.msra.mxu0 0.0
        %266 = vmatpush.msra.mxu0 0.0
        %267 = vmatpush.msra.mxu0 0.0
        %268 = vmatpush.msra.mxu0 0.0
        %269 = vmatpush.msra.mxu0 0.0
        %270 = vmatpush.msra.mxu0 0.0
        %271 = vmatpush.msra.mxu0 0.0
        %272 = vmatpush.msra.mxu0 0.0
        %273 = vmatpush.msra.mxu0 0.0
        %274 = vmatpush.msra.mxu0 %v228
        %275 = vmatpush.msra.mxu0 %v227
        %276 = vmatmul.f32.gmra.mxu0 %v238
        %v277 = vpop.f32.mrf.mxu0
        %v278 = vadd.f32 0.0, %v277
        %279 = vdwg.mxu0
        %280 = vmatpush.msra.mxu0 0.0
        %281 = vmatpush.msra.mxu0 0.0
        %282 = vmatpush.msra.mxu0 0.0
        %283 = vmatpush.msra.mxu0 0.0
        %284 = vmatpush.msra.mxu0 0.0
        %285 = vmatpush.msra.mxu0 0.0
        %286 = vmatpush.msra.mxu0 0.0
        %287 = vmatpush.msra.mxu0 0.0
        %288 = vmatpush.msra.mxu0 0.0
        %289 = vmatpush.msra.mxu0 0.0
        %290 = vmatpush.msra.mxu0 0.0
        %291 = vmatpush.msra.mxu0 0.0
        %292 = vmatpush.msra.mxu0 0.0
        %293 = vmatpush.msra.mxu0 0.0
        %294 = vmatpush.msra.mxu0 %v230
        %295 = vmatpush.msra.mxu0 %v229
        %296 = vmatmul.f32.gmra.mxu0 %v238
        %v297 = vpop.f32.mrf.mxu0
        %v298 = vadd.f32 0.0, %v297
        %299 = vdwg.mxu0
        %300 = vmatpush.msra.mxu0 0.0
        %301 = vmatpush.msra.mxu0 0.0
        %302 = vmatpush.msra.mxu0 0.0
        %303 = vmatpush.msra.mxu0 0.0
        %304 = vmatpush.msra.mxu0 0.0
        %305 = vmatpush.msra.mxu0 0.0
        %306 = vmatpush.msra.mxu0 0.0
        %307 = vmatpush.msra.mxu0 0.0
        %308 = vmatpush.msra.mxu0 0.0
        %309 = vmatpush.msra.mxu0 0.0
        %310 = vmatpush.msra.mxu0 0.0
        %311 = vmatpush.msra.mxu0 0.0
        %312 = vmatpush.msra.mxu0 0.0
        %313 = vmatpush.msra.mxu0 0.0
        %314 = vmatpush.msra.mxu0 %v232
        %315 = vmatpush.msra.mxu0 %v231
        %316 = vmatmul.f32.gmra.mxu0 %v238
        %v317 = vpop.f32.mrf.mxu0
        %v318 = vadd.f32 0.0, %v317
        %319 = vdwg.mxu0
        %v321 = vsel %vm236, %v258, 0
        %v324 = vsel %vm236, %v278, 0
        %v327 = vsel %vm236, %v298, 0
        %v330 = vsel %vm236, %v318, 0
        %332 = vmatpush.msra.mxu0 0.0
        %333 = vmatpush.msra.mxu0 0.0
        %334 = vmatpush.msra.mxu0 0.0
        %335 = vmatpush.msra.mxu0 0.0
        %336 = vmatpush.msra.mxu0 0.0
        %337 = vmatpush.msra.mxu0 0.0
        %338 = vmatpush.msra.mxu0 0.0
        %339 = vmatpush.msra.mxu0 0.0
        %340 = vmatpush.msra.mxu0 0.0
        %341 = vmatpush.msra.mxu0 0.0
        %342 = vmatpush.msra.mxu0 0.0
        %343 = vmatpush.msra.mxu0 0.0
        %344 = vmatpush.msra.mxu0 0.0
        %345 = vmatpush.msra.mxu0 0.0
        %346 = vmatpush.msra.mxu0 %v235
        %347 = vmatpush.msra.mxu0 %v234
        %348 = vmatmul.f32.gmra.mxu0 %v321
        %v349 = vpop.f32.mrf.mxu0
        %v350 = vadd.f32 0.0, %v349
        %351 = vmatmul.f32.gmra.mxu0 %v324
        %v352 = vpop.f32.mrf.mxu0
        %v353 = vadd.f32 0.0, %v352
        %354 = vmatmul.f32.gmra.mxu0 %v327
        %v355 = vpop.f32.mrf.mxu0
        %v356 = vadd.f32 0.0, %v355
        %357 = vmatmul.f32.gmra.mxu0 %v330
        %v358 = vpop.f32.mrf.mxu0
        %v359 = vadd.f32 0.0, %v358
        %360 = vdwg.mxu0
        %vm361 = vcmask 97280
        %362 = vst.msk [vmem:[%s222] sm:$0xff] %vm361, %v350
        %363 = vst.msk [vmem:[%s222 + $0x8] sm:$0xff] %vm361, %v353
        %364 = vst.msk [vmem:[%s222 + $0x10] sm:$0xff] %vm361, %v356
        %365 = vst.msk [vmem:[%s222 + $0x18] sm:$0xff] %vm361, %v359
        %s366 = sand.u32 %s97, 1
        %s367 = scalar_lea.sflag [#allocation4], %s366
        %s368 = sand.u32 %s97, 1
        %s369 = smul.addr %s368, 32
        %s370 = scalar_lea.vmem [#allocation8], %s369
        // Predicated region
        $region45: #{tpu_custom_call.1} parent=31 // pred_check
          %p371 = pneg %p107
        $region46: #{tpu_custom_call.1} parent=31 // pred_check_branch
          %373 = sbr.rel (%p371) target = $region48
        $region47: #{tpu_custom_call.1} parent=31 // pred_region
          %s374 = smul.u32 4, %s21
          %376 = vsyncadd %s367, 0
          %s377 = smul.addr %s374, 8
          %s378 = scalar_lea.hbm %s3, %s377
          %s379 = sshll.u32 %s370, 4
          %s380 = int_to_ptr.vmem [resolvable:$true] %s379
          %s381 = sshll.u32 %s378, 4
          %s382 = int_to_ptr.hbm [resolvable:$true] %s381
          %387 = dma.vmem_to_hbm [thread:$0]  %s380, 512, %s382, %s367, 128, 128, 8
        $region48: #{tpu_custom_call.1} parent=31 // pred_fallthru
          _
      $region32: #{tpu_custom_call.1} parent=5 // pred_fallthru
        _
      %p388 = scmp.le.s32.totalorder 2, %s16
      // Predicated region
      $region49: #{tpu_custom_call.1} parent=5 // pred_check
        %p389 = pneg %p388
      $region50: #{tpu_custom_call.1} parent=5 // pred_check_branch
        %391 = sbr.rel (%p389) target = $region52
      $region51: #{tpu_custom_call.1} parent=5 // pred_region
        %s392 = ssub.s32 %s16, 2
        // Predicated region
        $region53: #{tpu_custom_call.1} parent=51 // pred_check
          %p393 = pneg %p113
        $region54: #{tpu_custom_call.1} parent=51 // pred_check_branch
          %395 = sbr.rel (%p393) target = $region56
        $region55: #{tpu_custom_call.1} parent=51 // pred_region
          %s396 = sand.u32 %s98, 1
          %s397 = scalar_lea.sflag [#allocation4], %s396
          %s398 = sand.u32 %s98, 1
          %s399 = smul.addr %s398, 32
          %s400 = scalar_lea.vmem [#allocation8], %s399
          %402 = dma.done %s397, 512
        $region56: #{tpu_custom_call.1} parent=51 // pred_fallthru
          _
      $region52: #{tpu_custom_call.1} parent=5 // pred_fallthru
        _
    $region6: #{tpu_custom_call.1} parent=1 // loop_footer
      %s20 = sadd.s32 1, %s16
    $region7: #{tpu_custom_call.1} parent=1 // loop_footer_branch
      %15 = sbr.rel target = $region3
    $region8: #{tpu_custom_call.1} parent=1 // loop_exit
      _
    %403 = vsyncpa [#allocation3], 1
    %s404 = scalar_lea.sflag [#allocation3], 1
    %405 = vsyncpa %s404, 1
    %406 = vsyncpa [#allocation6], 1
    %407 = vsyncpa [#allocation4], 1
    %s408 = scalar_lea.sflag [#allocation4], 1
    %409 = vsyncpa %s408, 1

</llo_original>
